<compile_context>
chip_gen: v7x
topology: tpu7x:2x2x1
jax: 0.10.0
libtpu: 0.0.40
codegen_flags: <defaults>
</compile_context>

<pallas_src>
import jax
import jax.numpy as jnp
from jax.experimental import pallas as pl
from jax.experimental.pallas import tpu as pltpu

LANE = 128


def _round_up(n, m=LANE):
    return ((n + m - 1) // m) * m


def encoder_kernel(s_ref, w1, b1, w2, b2, w3, b3, w4, b4, o_ref):
    eps = jnp.float32(1e-5)

    def linear(x, w_ref, b_ref):
        # Weights are stored transposed as (in, out): x @ W + b == PyTorch x @ W.T + b
        return jnp.dot(x, w_ref[...], preferred_element_type=jnp.float32) + b_ref[...]

    def relu_bn(x):
        x = jnp.maximum(x, 0.0)
        m = jnp.mean(x, axis=0, keepdims=True)
        xc = x - m                                     # computed once, reused below
        v = jnp.mean(xc * xc, axis=0, keepdims=True)   # biased variance (BN train mode)
        return xc * jax.lax.rsqrt(v + eps)             # gamma=1, beta=0

    x = s_ref[...]
    h = relu_bn(linear(x, w1, b1))
    h = relu_bn(linear(h, w2, b2))
    h = relu_bn(linear(h, w3, b3))
    o_ref[...] = linear(h, w4, b4).astype(o_ref.dtype)


def encoder_forward(s, params):
    """s: (B, state_input_size) float32. params: list of (W_t, b) with W_t = (in, out)."""
    B, d_in = s.shape
    hidden_rep_size = params[-1][0].shape[1]

    # Lane-dense zero-padding of every feature dim to a multiple of 128.
    padded_params = []
    for w, b in params:
        din, dout = w.shape
        dinp, doutp = _round_up(din), _round_up(dout)
        wp = jnp.zeros((dinp, doutp), jnp.float32).at[:din, :dout].set(
            w.astype(jnp.float32))
        bp = jnp.zeros((1, doutp), jnp.float32).at[:, :dout].set(
            b.reshape(1, -1).astype(jnp.float32))
        padded_params.append((wp, bp))

    d_in_p = padded_params[0][0].shape[0]
    d_out_p = padded_params[-1][0].shape[1]
    sp = jnp.zeros((B, d_in_p), jnp.float32).at[:, :d_in].set(s.astype(jnp.float32))

    flat = [sp]
    for w, b in padded_params:
        flat.append(w)
        flat.append(b)

    # Advisory cost estimate (padded shapes).
    matmul_flops = 2 * B * sum(int(w.shape[0]) * int(w.shape[1]) for w, _ in padded_params)
    elementwise_flops = 8 * B * sum(int(w.shape[1]) for w, _ in padded_params[:-1])
    transcendentals = sum(int(w.shape[1]) for w, _ in padded_params[:-1])  # rsqrt per BN feature
    bytes_accessed = sum(int(x.size) * 4 for x in flat) + B * d_out_p * 4

    vmem_spec = pl.BlockSpec(memory_space=pltpu.MemorySpace.VMEM)
    out_padded = pl.pallas_call(
        encoder_kernel,
        out_shape=jax.ShapeDtypeStruct((B, d_out_p), jnp.float32),
        in_specs=[vmem_spec] * len(flat),
        out_specs=vmem_spec,
        cost_estimate=pl.CostEstimate(
            flops=int(matmul_flops + elementwise_flops),
            transcendentals=int(transcendentals),
            bytes_accessed=int(bytes_accessed),
        ),
    )(*flat)
    # Slice back to the real hidden_rep_size (padded columns are exactly 0).
    return out_padded[:, :hidden_rep_size]


def make_params(key, state_input_size, hidden_size, hidden_rep_size):
    """Deterministic synthetic params matching init_weights: W ~ N(0.1, 0.01), b = 0."""
    dims = [
        (state_input_size, hidden_size),
        (hidden_size, hidden_size // 2),
        (hidden_size // 2, hidden_size // 4),
        (hidden_size // 4, hidden_rep_size),
    ]
    params = []
    for i, (din, dout) in enumerate(dims):
        k = jax.random.fold_in(key, i)
        w_t = 0.1 + 0.01 * jax.random.normal(k, (din, dout), dtype=jnp.float32)
        b = jnp.zeros((1, dout), dtype=jnp.float32)
        params.append((w_t, b))
    return params


def encoder_ref(s, params):
    """Pure-JAX reference (unpadded) for correctness check."""
    eps = 1e-5
    x = s
    for i, (w, b) in enumerate(params):
        x = x @ w + b
        if i < len(params) - 1:
            x = jnp.maximum(x, 0.0)
            m = jnp.mean(x, axis=0, keepdims=True)
            v = jnp.mean((x - m) ** 2, axis=0, keepdims=True)
            x = (x - m) / jnp.sqrt(v + eps)
    return x


if __name__ == "__main__":
    B = 8
    state_input_size = 32
    hidden_size = 64
    hidden_rep_size = 16

    key = jax.random.PRNGKey(0)
    k_s, k_p = jax.random.split(key)
    s = jax.random.normal(k_s, (B, state_input_size), dtype=jnp.float32)
    a = jax.random.normal(jax.random.fold_in(key, 123), (B, 8), dtype=jnp.float32)  # unused, as in forward()

    params = make_params(k_p, state_input_size, hidden_size, hidden_rep_size)

    out = encoder_forward(s, params)
    jax.block_until_ready(out)

    ref = encoder_ref(s, params)
    assert out.shape == (B, hidden_rep_size)
    assert jnp.allclose(out, ref, atol=1e-4, rtol=1e-4), "mismatch vs pure-JAX reference"

    print("KERNEL_OK")
</pallas_src>

<mosaic_0001>
module attributes {stable_mosaic.version = 11 : i64} {
  func.func @encoder_kernel(%arg0: memref<8x128xf32, #tpu.memory_space<vmem>>, %arg1: memref<128x128xf32, #tpu.memory_space<vmem>>, %arg2: memref<1x128xf32, #tpu.memory_space<vmem>>, %arg3: memref<128x128xf32, #tpu.memory_space<vmem>>, %arg4: memref<1x128xf32, #tpu.memory_space<vmem>>, %arg5: memref<128x128xf32, #tpu.memory_space<vmem>>, %arg6: memref<1x128xf32, #tpu.memory_space<vmem>>, %arg7: memref<128x128xf32, #tpu.memory_space<vmem>>, %arg8: memref<1x128xf32, #tpu.memory_space<vmem>>, %arg9: memref<8x128xf32, #tpu.memory_space<vmem>>) attributes {dimension_semantics = [], scalar_prefetch = 0 : i64, scratch_operands = 0 : i64, tpu.core_type = #tpu.core_type<tc>} {
    %c0 = arith.constant 0 : index
    %c0_0 = arith.constant 0 : index
    %0 = vector.load %arg0[%c0, %c0_0] : memref<8x128xf32, #tpu.memory_space<vmem>>, vector<8x128xf32>
    %c0_1 = arith.constant 0 : index
    %c0_2 = arith.constant 0 : index
    %1 = vector.load %arg1[%c0_1, %c0_2] : memref<128x128xf32, #tpu.memory_space<vmem>>, vector<128x128xf32>
    %cst = arith.constant dense<0.000000e+00> : vector<8x128xf32>
    %2 = tpu.matmul %0, %1, %cst {dimension_numbers = #tpu.dot_dimension_numbers<[1], [0], [0], [1], [0, 0, 1, 1], [], []>} : vector<8x128xf32>, vector<128x128xf32>, vector<8x128xf32> -> vector<8x128xf32>
    %c0_3 = arith.constant 0 : index
    %c0_4 = arith.constant 0 : index
    %3 = vector.load %arg2[%c0_3, %c0_4] : memref<1x128xf32, #tpu.memory_space<vmem>>, vector<1x128xf32>
    %4 = vector.broadcast %3 : vector<1x128xf32> to vector<8x128xf32>
    %5 = arith.addf %2, %4 : vector<8x128xf32>
    %cst_5 = arith.constant 0.000000e+00 : f32
    %6 = vector.broadcast %cst_5 : f32 to vector<8x128xf32>
    %7 = arith.maximumf %5, %6 : vector<8x128xf32>
    %cst_6 = arith.constant dense<0.000000e+00> : vector<128xf32>
    %8 = vector.multi_reduction <add>, %7, %cst_6 [0] : vector<8x128xf32> to vector<128xf32>
    %9 = vector.shape_cast %8 : vector<128xf32> to vector<1x128xf32>
    %cst_7 = arith.constant 8.000000e+00 : f32
    %10 = vector.broadcast %cst_7 : f32 to vector<1x128xf32>
    %11 = arith.divf %9, %10 : vector<1x128xf32>
    %12 = vector.broadcast %11 : vector<1x128xf32> to vector<8x128xf32>
    %13 = arith.subf %7, %12 : vector<8x128xf32>
    %14 = arith.mulf %13, %13 : vector<8x128xf32>
    %cst_8 = arith.constant dense<0.000000e+00> : vector<128xf32>
    %15 = vector.multi_reduction <add>, %14, %cst_8 [0] : vector<8x128xf32> to vector<128xf32>
    %16 = vector.shape_cast %15 : vector<128xf32> to vector<1x128xf32>
    %cst_9 = arith.constant 8.000000e+00 : f32
    %17 = vector.broadcast %cst_9 : f32 to vector<1x128xf32>
    %18 = arith.divf %16, %17 : vector<1x128xf32>
    %cst_10 = arith.constant 9.99999974E-6 : f32
    %19 = vector.broadcast %cst_10 : f32 to vector<1x128xf32>
    %20 = arith.addf %18, %19 : vector<1x128xf32>
    %21 = math.rsqrt %20 : vector<1x128xf32>
    %22 = vector.broadcast %21 : vector<1x128xf32> to vector<8x128xf32>
    %23 = arith.mulf %13, %22 : vector<8x128xf32>
    %c0_11 = arith.constant 0 : index
    %c0_12 = arith.constant 0 : index
    %24 = vector.load %arg3[%c0_11, %c0_12] : memref<128x128xf32, #tpu.memory_space<vmem>>, vector<128x128xf32>
    %cst_13 = arith.constant dense<0.000000e+00> : vector<8x128xf32>
    %25 = tpu.matmul %23, %24, %cst_13 {dimension_numbers = #tpu.dot_dimension_numbers<[1], [0], [0], [1], [0, 0, 1, 1], [], []>} : vector<8x128xf32>, vector<128x128xf32>, vector<8x128xf32> -> vector<8x128xf32>
    %c0_14 = arith.constant 0 : index
    %c0_15 = arith.constant 0 : index
    %26 = vector.load %arg4[%c0_14, %c0_15] : memref<1x128xf32, #tpu.memory_space<vmem>>, vector<1x128xf32>
    %27 = vector.broadcast %26 : vector<1x128xf32> to vector<8x128xf32>
    %28 = arith.addf %25, %27 : vector<8x128xf32>
    %cst_16 = arith.constant 0.000000e+00 : f32
    %29 = vector.broadcast %cst_16 : f32 to vector<8x128xf32>
    %30 = arith.maximumf %28, %29 : vector<8x128xf32>
    %cst_17 = arith.constant dense<0.000000e+00> : vector<128xf32>
    %31 = vector.multi_reduction <add>, %30, %cst_17 [0] : vector<8x128xf32> to vector<128xf32>
    %32 = vector.shape_cast %31 : vector<128xf32> to vector<1x128xf32>
    %cst_18 = arith.constant 8.000000e+00 : f32
    %33 = vector.broadcast %cst_18 : f32 to vector<1x128xf32>
    %34 = arith.divf %32, %33 : vector<1x128xf32>
    %35 = vector.broadcast %34 : vector<1x128xf32> to vector<8x128xf32>
    %36 = arith.subf %30, %35 : vector<8x128xf32>
    %37 = arith.mulf %36, %36 : vector<8x128xf32>
    %cst_19 = arith.constant dense<0.000000e+00> : vector<128xf32>
    %38 = vector.multi_reduction <add>, %37, %cst_19 [0] : vector<8x128xf32> to vector<128xf32>
    %39 = vector.shape_cast %38 : vector<128xf32> to vector<1x128xf32>
    %cst_20 = arith.constant 8.000000e+00 : f32
    %40 = vector.broadcast %cst_20 : f32 to vector<1x128xf32>
    %41 = arith.divf %39, %40 : vector<1x128xf32>
    %cst_21 = arith.constant 9.99999974E-6 : f32
    %42 = vector.broadcast %cst_21 : f32 to vector<1x128xf32>
    %43 = arith.addf %41, %42 : vector<1x128xf32>
    %44 = math.rsqrt %43 : vector<1x128xf32>
    %45 = vector.broadcast %44 : vector<1x128xf32> to vector<8x128xf32>
    %46 = arith.mulf %36, %45 : vector<8x128xf32>
    %c0_22 = arith.constant 0 : index
    %c0_23 = arith.constant 0 : index
    %47 = vector.load %arg5[%c0_22, %c0_23] : memref<128x128xf32, #tpu.memory_space<vmem>>, vector<128x128xf32>
    %cst_24 = arith.constant dense<0.000000e+00> : vector<8x128xf32>
    %48 = tpu.matmul %46, %47, %cst_24 {dimension_numbers = #tpu.dot_dimension_numbers<[1], [0], [0], [1], [0, 0, 1, 1], [], []>} : vector<8x128xf32>, vector<128x128xf32>, vector<8x128xf32> -> vector<8x128xf32>
    %c0_25 = arith.constant 0 : index
    %c0_26 = arith.constant 0 : index
    %49 = vector.load %arg6[%c0_25, %c0_26] : memref<1x128xf32, #tpu.memory_space<vmem>>, vector<1x128xf32>
    %50 = vector.broadcast %49 : vector<1x128xf32> to vector<8x128xf32>
    %51 = arith.addf %48, %50 : vector<8x128xf32>
    %cst_27 = arith.constant 0.000000e+00 : f32
    %52 = vector.broadcast %cst_27 : f32 to vector<8x128xf32>
    %53 = arith.maximumf %51, %52 : vector<8x128xf32>
    %cst_28 = arith.constant dense<0.000000e+00> : vector<128xf32>
    %54 = vector.multi_reduction <add>, %53, %cst_28 [0] : vector<8x128xf32> to vector<128xf32>
    %55 = vector.shape_cast %54 : vector<128xf32> to vector<1x128xf32>
    %cst_29 = arith.constant 8.000000e+00 : f32
    %56 = vector.broadcast %cst_29 : f32 to vector<1x128xf32>
    %57 = arith.divf %55, %56 : vector<1x128xf32>
    %58 = vector.broadcast %57 : vector<1x128xf32> to vector<8x128xf32>
    %59 = arith.subf %53, %58 : vector<8x128xf32>
    %60 = arith.mulf %59, %59 : vector<8x128xf32>
    %cst_30 = arith.constant dense<0.000000e+00> : vector<128xf32>
    %61 = vector.multi_reduction <add>, %60, %cst_30 [0] : vector<8x128xf32> to vector<128xf32>
    %62 = vector.shape_cast %61 : vector<128xf32> to vector<1x128xf32>
    %cst_31 = arith.constant 8.000000e+00 : f32
    %63 = vector.broadcast %cst_31 : f32 to vector<1x128xf32>
    %64 = arith.divf %62, %63 : vector<1x128xf32>
    %cst_32 = arith.constant 9.99999974E-6 : f32
    %65 = vector.broadcast %cst_32 : f32 to vector<1x128xf32>
    %66 = arith.addf %64, %65 : vector<1x128xf32>
    %67 = math.rsqrt %66 : vector<1x128xf32>
    %68 = vector.broadcast %67 : vector<1x128xf32> to vector<8x128xf32>
    %69 = arith.mulf %59, %68 : vector<8x128xf32>
    %c0_33 = arith.constant 0 : index
    %c0_34 = arith.constant 0 : index
    %70 = vector.load %arg7[%c0_33, %c0_34] : memref<128x128xf32, #tpu.memory_space<vmem>>, vector<128x128xf32>
    %cst_35 = arith.constant dense<0.000000e+00> : vector<8x128xf32>
    %71 = tpu.matmul %69, %70, %cst_35 {dimension_numbers = #tpu.dot_dimension_numbers<[1], [0], [0], [1], [0, 0, 1, 1], [], []>} : vector<8x128xf32>, vector<128x128xf32>, vector<8x128xf32> -> vector<8x128xf32>
    %c0_36 = arith.constant 0 : index
    %c0_37 = arith.constant 0 : index
    %72 = vector.load %arg8[%c0_36, %c0_37] : memref<1x128xf32, #tpu.memory_space<vmem>>, vector<1x128xf32>
    %73 = vector.broadcast %72 : vector<1x128xf32> to vector<8x128xf32>
    %74 = arith.addf %71, %73 : vector<8x128xf32>
    %c0_38 = arith.constant 0 : index
    %c0_39 = arith.constant 0 : index
    %75 = vector.load %arg9[%c0_38, %c0_39] : memref<8x128xf32, #tpu.memory_space<vmem>>, vector<8x128xf32>
    tpu.vector_store %arg9[%c0_38, %c0_39], %74 {strides = array<i32>} : memref<8x128xf32, #tpu.memory_space<vmem>>, vector<8x128xf32>,
    return
  }
}

</mosaic_0001>

<llo_original>
// kernel: tpu_custom_call.1
$region0: #{tpu_custom_call.1}
  #allocation0 [shape = 'u32[]', space=smem, size = 0x4, offset = 0x4, fixed_abs, tag = 'smem constant byte address 0x4 - core index']
  #allocation1 [shape = 'u32[144,128]{1,0:T(1,128)}', space=vmem, size = 0x12000, scoped, tag = 'internal scratch']
  %s0 = inlined_call_operand.hbm [shape: f32[8,128], index: 0, kind: input, shape index: {}]
  %s1 = inlined_call_operand.hbm [shape: f32[128,128], index: 1, kind: input, shape index: {}]
  %s2 = inlined_call_operand.vmem [shape: f32[1,128], index: 2, kind: input, shape index: {}]
  %s3 = inlined_call_operand.hbm [shape: f32[128,128], index: 3, kind: input, shape index: {}]
  %s4 = inlined_call_operand.vmem [shape: f32[1,128], index: 4, kind: input, shape index: {}]
  %s5 = inlined_call_operand.hbm [shape: f32[128,128], index: 5, kind: input, shape index: {}]
  %s6 = inlined_call_operand.vmem [shape: f32[1,128], index: 6, kind: input, shape index: {}]
  %s7 = inlined_call_operand.hbm [shape: f32[128,128], index: 7, kind: input, shape index: {}]
  %s8 = inlined_call_operand.vmem [shape: f32[1,128], index: 8, kind: input, shape index: {}]
  %s9 = inlined_call_operand.hbm [shape: f32[8,128], index: 9, kind: output, shape index: {}]
  %s10 = sld [smem:[#allocation0]]
  $region66: #{tpu_custom_call.1} parent=0
    _
  %s12 = ssub.s32 1, %s10
  %s13 = scalar_select 0, %s12, %s10
  $region1: #{tpu_custom_call.1} parent=0
    #allocation2 [shape = 'u8[4096]{0}', space=vmem, size = 0x1000, scoped, tag = 'input window, operand 0, single buffered']
    #allocation3 [shape = 's32[1]{0}', space=sflag, size = 0x4, scoped, tag = 'scoped memory for tpu_custom_call.1']
    #allocation4 [shape = 's32[1]{0}', space=sflag, size = 0x4, scoped, tag = 'scoped memory for tpu_custom_call.1']
    #allocation5 [shape = 'u8[65536]{0}', space=vmem, size = 0x10000, scoped, tag = 'input window, operand 1, single buffered']
    #allocation6 [shape = 's32[1]{0}', space=sflag, size = 0x4, scoped, tag = 'scoped memory for tpu_custom_call.1']
    #allocation7 [shape = 'u8[65536]{0}', space=vmem, size = 0x10000, scoped, tag = 'input window, operand 3, single buffered']
    #allocation8 [shape = 'u8[65536]{0}', space=vmem, size = 0x10000, scoped, tag = 'input window, operand 5, single buffered']
    #allocation9 [shape = 's32[1]{0}', space=sflag, size = 0x4, scoped, tag = 'scoped memory for tpu_custom_call.1']
    #allocation10 [shape = 'u8[65536]{0}', space=vmem, size = 0x10000, scoped, tag = 'input window, operand 7, single buffered']
    #allocation11 [shape = 'u8[4096]{0}', space=vmem, size = 0x1000, scoped, tag = 'output window, operand 0, single buffered']
    %14 = vsyncpa [#allocation3], 0
    %15 = vsyncpa [#allocation6], 0
    %16 = vsyncpa [#allocation9], 0
    %17 = vsyncpa [#allocation4], 0
    // Predicated region
    $region2: #{tpu_custom_call.1} parent=1 // pred_check
      _
    $region3: #{tpu_custom_call.1} parent=1 // pred_check_branch
      %19 = sbr.rel (0) target = $region5
    $region4: #{tpu_custom_call.1} parent=1 // pred_region
      %s21 = ssub.s32 128, 128
      %22 = vsyncadd [#allocation3], %s21
      %s24 = sshll.u32 [#allocation2], 4
      %s25 = int_to_ptr.vmem [resolvable:$true] %s24
      %27 = dma.hbm_to_vmem [thread:$0]  %s0, 128, %s25, [#allocation3]
    $region5: #{tpu_custom_call.1} parent=1 // pred_fallthru
      _
    // Predicated region
    $region6: #{tpu_custom_call.1} parent=1 // pred_check
      _
    $region7: #{tpu_custom_call.1} parent=1 // pred_check_branch
      %29 = sbr.rel (0) target = $region9
    $region8: #{tpu_custom_call.1} parent=1 // pred_region
      %s31 = ssub.s32 2048, 2048
      %32 = vsyncadd [#allocation6], %s31
      %s33 = sshll.u32 [#allocation5], 4
      %s34 = int_to_ptr.vmem [resolvable:$true] %s33
      %39 = dma.hbm_to_vmem [thread:$0]  %s1, 2048, %s34, [#allocation6], 128, 128, 8
    $region9: #{tpu_custom_call.1} parent=1 // pred_fallthru
      _
    // Predicated region
    $region10: #{tpu_custom_call.1} parent=1 // pred_check
      _
    $region11: #{tpu_custom_call.1} parent=1 // pred_check_branch
      %41 = sbr.rel (0) target = $region13
    $region12: #{tpu_custom_call.1} parent=1 // pred_region
      _
    $region13: #{tpu_custom_call.1} parent=1 // pred_fallthru
      _
    // Predicated region
    $region14: #{tpu_custom_call.1} parent=1 // pred_check
      _
    $region15: #{tpu_custom_call.1} parent=1 // pred_check_branch
      %43 = sbr.rel (0) target = $region17
    $region16: #{tpu_custom_call.1} parent=1 // pred_region
      %s45 = ssub.s32 2048, 2048
      %46 = vsyncadd [#allocation6], %s45
      %s47 = sshll.u32 [#allocation7], 4
      %s48 = int_to_ptr.vmem [resolvable:$true] %s47
      %53 = dma.hbm_to_vmem [thread:$0]  %s3, 2048, %s48, [#allocation6], 128, 128, 8
    $region17: #{tpu_custom_call.1} parent=1 // pred_fallthru
      _
    // Predicated region
    $region18: #{tpu_custom_call.1} parent=1 // pred_check
      _
    $region19: #{tpu_custom_call.1} parent=1 // pred_check_branch
      %55 = sbr.rel (0) target = $region21
    $region20: #{tpu_custom_call.1} parent=1 // pred_region
      _
    $region21: #{tpu_custom_call.1} parent=1 // pred_fallthru
      _
    // Predicated region
    $region22: #{tpu_custom_call.1} parent=1 // pred_check
      _
    $region23: #{tpu_custom_call.1} parent=1 // pred_check_branch
      %57 = sbr.rel (0) target = $region25
    $region24: #{tpu_custom_call.1} parent=1 // pred_region
      %s59 = ssub.s32 2048, 2048
      %60 = vsyncadd [#allocation9], %s59
      %s61 = sshll.u32 [#allocation8], 4
      %s62 = int_to_ptr.vmem [resolvable:$true] %s61
      %67 = dma.hbm_to_vmem [thread:$0]  %s5, 2048, %s62, [#allocation9], 128, 128, 8
    $region25: #{tpu_custom_call.1} parent=1 // pred_fallthru
      _
    // Predicated region
    $region26: #{tpu_custom_call.1} parent=1 // pred_check
      _
    $region27: #{tpu_custom_call.1} parent=1 // pred_check_branch
      %69 = sbr.rel (0) target = $region29
    $region28: #{tpu_custom_call.1} parent=1 // pred_region
      _
    $region29: #{tpu_custom_call.1} parent=1 // pred_fallthru
      _
    // Predicated region
    $region30: #{tpu_custom_call.1} parent=1 // pred_check
      _
    $region31: #{tpu_custom_call.1} parent=1 // pred_check_branch
      %71 = sbr.rel (0) target = $region33
    $region32: #{tpu_custom_call.1} parent=1 // pred_region
      %s73 = ssub.s32 2048, 2048
      %74 = vsyncadd [#allocation9], %s73
      %s75 = sshll.u32 [#allocation10], 4
      %s76 = int_to_ptr.vmem [resolvable:$true] %s75
      %81 = dma.hbm_to_vmem [thread:$0]  %s7, 2048, %s76, [#allocation9], 128, 128, 8
    $region33: #{tpu_custom_call.1} parent=1 // pred_fallthru
      _
    // Predicated region
    $region34: #{tpu_custom_call.1} parent=1 // pred_check
      _
    $region35: #{tpu_custom_call.1} parent=1 // pred_check_branch
      %83 = sbr.rel (0) target = $region37
    $region36: #{tpu_custom_call.1} parent=1 // pred_region
      _
    $region37: #{tpu_custom_call.1} parent=1 // pred_fallthru
      _
    // Predicated region
    $region38: #{tpu_custom_call.1} parent=1 // pred_check
      _
    $region39: #{tpu_custom_call.1} parent=1 // pred_check_branch
      %85 = sbr.rel (0) target = $region41
    $region40: #{tpu_custom_call.1} parent=1 // pred_region
      %86 = dma.done [#allocation3], 128
    $region41: #{tpu_custom_call.1} parent=1 // pred_fallthru
      _
    // Predicated region
    $region42: #{tpu_custom_call.1} parent=1 // pred_check
      _
    $region43: #{tpu_custom_call.1} parent=1 // pred_check_branch
      %88 = sbr.rel (0) target = $region45
    $region44: #{tpu_custom_call.1} parent=1 // pred_region
      %89 = dma.done [#allocation6], 2048
    $region45: #{tpu_custom_call.1} parent=1 // pred_fallthru
      _
    // Predicated region
    $region46: #{tpu_custom_call.1} parent=1 // pred_check
      _
    $region47: #{tpu_custom_call.1} parent=1 // pred_check_branch
      %91 = sbr.rel (0) target = $region49
    $region48: #{tpu_custom_call.1} parent=1 // pred_region
      %92 = dma.done [#allocation6], 2048
    $region49: #{tpu_custom_call.1} parent=1 // pred_fallthru
      _
    // Predicated region
    $region50: #{tpu_custom_call.1} parent=1 // pred_check
      _
    $region51: #{tpu_custom_call.1} parent=1 // pred_check_branch
      %94 = sbr.rel (0) target = $region53
    $region52: #{tpu_custom_call.1} parent=1 // pred_region
      %95 = dma.done [#allocation9], 2048
    $region53: #{tpu_custom_call.1} parent=1 // pred_fallthru
      _
    // Predicated region
    $region54: #{tpu_custom_call.1} parent=1 // pred_check
      _
    $region55: #{tpu_custom_call.1} parent=1 // pred_check_branch
      %97 = sbr.rel (0) target = $region57
    $region56: #{tpu_custom_call.1} parent=1 // pred_region
      %98 = dma.done [#allocation9], 2048
    $region57: #{tpu_custom_call.1} parent=1 // pred_fallthru
      _
    %v99 = vld [vmem:[#allocation2] sm:$0xff]
    %v100 = vld [vmem:[#allocation5] sm:$0xff]
    %v101 = vld [vmem:[#allocation5 + $0x8] sm:$0xff]
    %v102 = vld [vmem:[#allocation5 + $0x10] sm:$0xff]
    %v103 = vld [vmem:[#allocation5 + $0x18] sm:$0xff]
    %v104 = vld [vmem:[#allocation5 + $0x20] sm:$0xff]
    %v105 = vld [vmem:[#allocation5 + $0x28] sm:$0xff]
    %v106 = vld [vmem:[#allocation5 + $0x30] sm:$0xff]
    %v107 = vld [vmem:[#allocation5 + $0x38] sm:$0xff]
    %v108 = vld [vmem:[#allocation5 + $0x40] sm:$0xff]
    %v109 = vld [vmem:[#allocation5 + $0x48] sm:$0xff]
    %v110 = vld [vmem:[#allocation5 + $0x50] sm:$0xff]
    %v111 = vld [vmem:[#allocation5 + $0x58] sm:$0xff]
    %v112 = vld [vmem:[#allocation5 + $0x60] sm:$0xff]
    %v113 = vld [vmem:[#allocation5 + $0x68] sm:$0xff]
    %v114 = vld [vmem:[#allocation5 + $0x70] sm:$0xff]
    %v115 = vld [vmem:[#allocation5 + $0x78] sm:$0xff]
    %v116 = vld [vmem:[%s2] sm:$0x1]
    %v118 = vlaneseq
    %v119 = vshrl.u32 %v118, 7
    %v120 = vsub.s32 0, %v119
    %v121 = vrot.slane %v116, %v120
    %123 = vmatprep.subr.mxu0 0.0
    %124 = vmatpush1.msra.mxu0 %v100
    %125 = vmatprep.subr.mxu0 0.0
    %126 = vmatpush1.msra.mxu0 %v101
    %127 = vmatprep.subr.mxu0 0.0
    %128 = vmatpush1.msra.mxu0 %v102
    %129 = vmatprep.subr.mxu0 0.0
    %130 = vmatpush1.msra.mxu0 %v103
    %131 = vmatprep.subr.mxu0 0.0
    %132 = vmatpush1.msra.mxu0 %v104
    %133 = vmatprep.subr.mxu0 0.0
    %134 = vmatpush1.msra.mxu0 %v105
    %135 = vmatprep.subr.mxu0 0.0
    %136 = vmatpush1.msra.mxu0 %v106
    %137 = vmatprep.subr.mxu0 0.0
    %138 = vmatpush1.msra.mxu0 %v107
    %139 = vmatprep.subr.mxu0 0.0
    %140 = vmatpush1.msra.mxu0 %v108
    %141 = vmatprep.subr.mxu0 0.0
    %142 = vmatpush1.msra.mxu0 %v109
    %143 = vmatprep.subr.mxu0 0.0
    %144 = vmatpush1.msra.mxu0 %v110
    %145 = vmatprep.subr.mxu0 0.0
    %146 = vmatpush1.msra.mxu0 %v111
    %147 = vmatprep.subr.mxu0 0.0
    %148 = vmatpush1.msra.mxu0 %v112
    %149 = vmatprep.subr.mxu0 0.0
    %150 = vmatpush1.msra.mxu0 %v113
    %151 = vmatprep.subr.mxu0 0.0
    %152 = vmatpush1.msra.mxu0 %v114
    %153 = vmatprep.subr.mxu0 0.0
    %154 = vmatpush1.msra.mxu0 %v115
    %155 = vmatprep.subr.mxu0 0.0
    %156 = vmatpush1.msra.mxu0 0.0
    %157 = vmatprep.subr.mxu0 0.0
    %158 = vmatpush1.msra.mxu0 0.0
    %159 = vmatprep.subr.mxu0 0.0
    %160 = vmatpush1.msra.mxu0 0.0
    %161 = vmatprep.subr.mxu0 0.0
    %162 = vmatpush1.msra.mxu0 0.0
    %163 = vmatprep.subr.mxu0 0.0
    %164 = vmatpush1.msra.mxu0 0.0
    %165 = vmatprep.subr.mxu0 0.0
    %166 = vmatpush1.msra.mxu0 0.0
    %167 = vmatprep.subr.mxu0 0.0
    %168 = vmatpush1.msra.mxu0 0.0
    %169 = vmatprep.subr.mxu0 0.0
    %170 = vmatpush1.msra.mxu0 0.0
    %171 = vmatprep.subr.mxu0 0.0
    %172 = vmatpush1.msra.mxu0 0.0
    %173 = vmatprep.subr.mxu0 0.0
    %174 = vmatpush1.msra.mxu0 0.0
    %175 = vmatprep.subr.mxu0 0.0
    %176 = vmatpush1.msra.mxu0 0.0
    %177 = vmatprep.subr.mxu0 0.0
    %178 = vmatpush1.msra.mxu0 0.0
    %179 = vmatprep.subr.mxu0 0.0
    %180 = vmatpush1.msra.mxu0 0.0
    %181 = vmatprep.subr.mxu0 0.0
    %182 = vmatpush1.msra.mxu0 0.0
    %183 = vmatprep.subr.mxu0 0.0
    %184 = vmatpush1.msra.mxu0 0.0
    %185 = vmatprep.subr.mxu0 0.0
    %186 = vmatpush1.msra.mxu0 0.0
    %187 = vmatprep.mubr.f32.mxu0 0.0
    %188 = vmatmul.mubr.f32.gmra.mrb[0].mxu0 %v99
    %v189 = vpop.f32.mrb[0].mxu0
    %v190 = vadd.f32 %v121, %v189
    %v191 = vpop.f32.mrb[0].mxu0
    %192 = vdwg.mxu0
    %v193 = vmax.f32 %v190, 0.0
    %v194 = vrot.slane %v193, 4
    %v195 = vadd.f32 %v193, %v194
    %v196 = vrot.slane %v195, 2
    %v197 = vadd.f32 %v195, %v196
    %v198 = vrot.slane %v197, 1
    %v199 = vadd.f32 %v197, %v198
    %v200 = vrcp.pop 8.0
    %v201 = vmul.f32 %v199, %v200
    %v202 = vsub.f32 %v193, %v201
    %v203 = vmul.f32 %v202, %v202
    %v204 = vrot.slane %v203, 4
    %v205 = vadd.f32 %v203, %v204
    %v206 = vrot.slane %v205, 2
    %v207 = vadd.f32 %v205, %v206
    %v208 = vrot.slane %v207, 1
    %v209 = vadd.f32 %v207, %v208
    %v210 = vmul.f32 %v209, %v200
    %v211 = vadd.f32 %v210, 1e-05
    %v212 = vrsqrt.pop %v211
    %v213 = vmul.f32 %v202, %v212
    %v214 = vld [vmem:[#allocation7] sm:$0xff]
    %v215 = vld [vmem:[#allocation7 + $0x8] sm:$0xff]
    %v216 = vld [vmem:[#allocation7 + $0x10] sm:$0xff]
    %v217 = vld [vmem:[#allocation7 + $0x18] sm:$0xff]
    %v218 = vld [vmem:[#allocation7 + $0x20] sm:$0xff]
    %v219 = vld [vmem:[#allocation7 + $0x28] sm:$0xff]
    %v220 = vld [vmem:[#allocation7 + $0x30] sm:$0xff]
    %v221 = vld [vmem:[#allocation7 + $0x38] sm:$0xff]
    %v222 = vld [vmem:[#allocation7 + $0x40] sm:$0xff]
    %v223 = vld [vmem:[#allocation7 + $0x48] sm:$0xff]
    %v224 = vld [vmem:[#allocation7 + $0x50] sm:$0xff]
    %v225 = vld [vmem:[#allocation7 + $0x58] sm:$0xff]
    %v226 = vld [vmem:[#allocation7 + $0x60] sm:$0xff]
    %v227 = vld [vmem:[#allocation7 + $0x68] sm:$0xff]
    %v228 = vld [vmem:[#allocation7 + $0x70] sm:$0xff]
    %v229 = vld [vmem:[#allocation7 + $0x78] sm:$0xff]
    %v230 = vld [vmem:[%s4] sm:$0x1]
    %v232 = vlaneseq
    %v233 = vshrl.u32 %v232, 7
    %v234 = vsub.s32 0, %v233
    %v235 = vrot.slane %v230, %v234
    %237 = vmatprep.subr.mxu0 0.0
    %238 = vmatpush1.msra.mxu0 %v214
    %239 = vmatprep.subr.mxu0 0.0
    %240 = vmatpush1.msra.mxu0 %v215
    %241 = vmatprep.subr.mxu0 0.0
    %242 = vmatpush1.msra.mxu0 %v216
    %243 = vmatprep.subr.mxu0 0.0
    %244 = vmatpush1.msra.mxu0 %v217
    %245 = vmatprep.subr.mxu0 0.0
    %246 = vmatpush1.msra.mxu0 %v218
    %247 = vmatprep.subr.mxu0 0.0
    %248 = vmatpush1.msra.mxu0 %v219
    %249 = vmatprep.subr.mxu0 0.0
    %250 = vmatpush1.msra.mxu0 %v220
    %251 = vmatprep.subr.mxu0 0.0
    %252 = vmatpush1.msra.mxu0 %v221
    %253 = vmatprep.subr.mxu0 0.0
    %254 = vmatpush1.msra.mxu0 %v222
    %255 = vmatprep.subr.mxu0 0.0
    %256 = vmatpush1.msra.mxu0 %v223
    %257 = vmatprep.subr.mxu0 0.0
    %258 = vmatpush1.msra.mxu0 %v224
    %259 = vmatprep.subr.mxu0 0.0
    %260 = vmatpush1.msra.mxu0 %v225
    %261 = vmatprep.subr.mxu0 0.0
    %262 = vmatpush1.msra.mxu0 %v226
    %263 = vmatprep.subr.mxu0 0.0
    %264 = vmatpush1.msra.mxu0 %v227
    %265 = vmatprep.subr.mxu0 0.0
    %266 = vmatpush1.msra.mxu0 %v228
    %267 = vmatprep.subr.mxu0 0.0
    %268 = vmatpush1.msra.mxu0 %v229
    %269 = vmatprep.subr.mxu0 0.0
    %270 = vmatpush1.msra.mxu0 0.0
    %271 = vmatprep.subr.mxu0 0.0
    %272 = vmatpush1.msra.mxu0 0.0
    %273 = vmatprep.subr.mxu0 0.0
    %274 = vmatpush1.msra.mxu0 0.0
    %275 = vmatprep.subr.mxu0 0.0
    %276 = vmatpush1.msra.mxu0 0.0
    %277 = vmatprep.subr.mxu0 0.0
    %278 = vmatpush1.msra.mxu0 0.0
    %279 = vmatprep.subr.mxu0 0.0
    %280 = vmatpush1.msra.mxu0 0.0
    %281 = vmatprep.subr.mxu0 0.0
    %282 = vmatpush1.msra.mxu0 0.0
    %283 = vmatprep.subr.mxu0 0.0
    %284 = vmatpush1.msra.mxu0 0.0
    %285 = vmatprep.subr.mxu0 0.0
    %286 = vmatpush1.msra.mxu0 0.0
    %287 = vmatprep.subr.mxu0 0.0
    %288 = vmatpush1.msra.mxu0 0.0
    %289 = vmatprep.subr.mxu0 0.0
    %290 = vmatpush1.msra.mxu0 0.0
    %291 = vmatprep.subr.mxu0 0.0
    %292 = vmatpush1.msra.mxu0 0.0
    %293 = vmatprep.subr.mxu0 0.0
    %294 = vmatpush1.msra.mxu0 0.0
    %295 = vmatprep.subr.mxu0 0.0
    %296 = vmatpush1.msra.mxu0 0.0
    %297 = vmatprep.subr.mxu0 0.0
    %298 = vmatpush1.msra.mxu0 0.0
    %299 = vmatprep.subr.mxu0 0.0
    %300 = vmatpush1.msra.mxu0 0.0
    %301 = vmatprep.mubr.f32.mxu0 0.0
    %302 = vmatmul.mubr.f32.gmra.mrb[0].mxu0 %v213
    %v303 = vpop.f32.mrb[0].mxu0
    %v304 = vadd.f32 %v235, %v303
    %v305 = vpop.f32.mrb[0].mxu0
    %306 = vdwg.mxu0
    %v307 = vmax.f32 %v304, 0.0
    %v308 = vrot.slane %v307, 4
    %v309 = vadd.f32 %v307, %v308
    %v310 = vrot.slane %v309, 2
    %v311 = vadd.f32 %v309, %v310
    %v312 = vrot.slane %v311, 1
    %v313 = vadd.f32 %v311, %v312
    %v314 = vmul.f32 %v313, %v200
    %v315 = vsub.f32 %v307, %v314
    %v316 = vmul.f32 %v315, %v315
    %v317 = vrot.slane %v316, 4
    %v318 = vadd.f32 %v316, %v317
    %v319 = vrot.slane %v318, 2
    %v320 = vadd.f32 %v318, %v319
    %v321 = vrot.slane %v320, 1
    %v322 = vadd.f32 %v320, %v321
    %v323 = vmul.f32 %v322, %v200
    %v324 = vadd.f32 %v323, 1e-05
    %v325 = vrsqrt.pop %v324
    %v326 = vmul.f32 %v315, %v325
    %v327 = vld [vmem:[#allocation8] sm:$0xff]
    %v328 = vld [vmem:[#allocation8 + $0x8] sm:$0xff]
    %v329 = vld [vmem:[#allocation8 + $0x10] sm:$0xff]
    %v330 = vld [vmem:[#allocation8 + $0x18] sm:$0xff]
    %v331 = vld [vmem:[#allocation8 + $0x20] sm:$0xff]
    %v332 = vld [vmem:[#allocation8 + $0x28] sm:$0xff]
    %v333 = vld [vmem:[#allocation8 + $0x30] sm:$0xff]
    %v334 = vld [vmem:[#allocation8 + $0x38] sm:$0xff]
    %v335 = vld [vmem:[#allocation8 + $0x40] sm:$0xff]
    %v336 = vld [vmem:[#allocation8 + $0x48] sm:$0xff]
    %v337 = vld [vmem:[#allocation8 + $0x50] sm:$0xff]
    %v338 = vld [vmem:[#allocation8 + $0x58] sm:$0xff]
    %v339 = vld [vmem:[#allocation8 + $0x60] sm:$0xff]
    %v340 = vld [vmem:[#allocation8 + $0x68] sm:$0xff]
    %v341 = vld [vmem:[#allocation8 + $0x70] sm:$0xff]
    %v342 = vld [vmem:[#allocation8 + $0x78] sm:$0xff]
    %v343 = vld [vmem:[%s6] sm:$0x1]
    %v345 = vlaneseq
    %v346 = vshrl.u32 %v345, 7
    %v347 = vsub.s32 0, %v346
    %v348 = vrot.slane %v343, %v347
    %350 = vmatprep.subr.mxu0 0.0
    %351 = vmatpush1.msra.mxu0 %v327
    %352 = vmatprep.subr.mxu0 0.0
    %353 = vmatpush1.msra.mxu0 %v328
    %354 = vmatprep.subr.mxu0 0.0
    %355 = vmatpush1.msra.mxu0 %v329
    %356 = vmatprep.subr.mxu0 0.0
    %357 = vmatpush1.msra.mxu0 %v330
    %358 = vmatprep.subr.mxu0 0.0
    %359 = vmatpush1.msra.mxu0 %v331
    %360 = vmatprep.subr.mxu0 0.0
    %361 = vmatpush1.msra.mxu0 %v332
    %362 = vmatprep.subr.mxu0 0.0
    %363 = vmatpush1.msra.mxu0 %v333
    %364 = vmatprep.subr.mxu0 0.0
    %365 = vmatpush1.msra.mxu0 %v334
    %366 = vmatprep.subr.mxu0 0.0
    %367 = vmatpush1.msra.mxu0 %v335
    %368 = vmatprep.subr.mxu0 0.0
    %369 = vmatpush1.msra.mxu0 %v336
    %370 = vmatprep.subr.mxu0 0.0
    %371 = vmatpush1.msra.mxu0 %v337
    %372 = vmatprep.subr.mxu0 0.0
    %373 = vmatpush1.msra.mxu0 %v338
    %374 = vmatprep.subr.mxu0 0.0
    %375 = vmatpush1.msra.mxu0 %v339
    %376 = vmatprep.subr.mxu0 0.0
    %377 = vmatpush1.msra.mxu0 %v340
    %378 = vmatprep.subr.mxu0 0.0
    %379 = vmatpush1.msra.mxu0 %v341
    %380 = vmatprep.subr.mxu0 0.0
    %381 = vmatpush1.msra.mxu0 %v342
    %382 = vmatprep.subr.mxu0 0.0
    %383 = vmatpush1.msra.mxu0 0.0
    %384 = vmatprep.subr.mxu0 0.0
    %385 = vmatpush1.msra.mxu0 0.0
    %386 = vmatprep.subr.mxu0 0.0
    %387 = vmatpush1.msra.mxu0 0.0
    %388 = vmatprep.subr.mxu0 0.0
    %389 = vmatpush1.msra.mxu0 0.0
    %390 = vmatprep.subr.mxu0 0.0
    %391 = vmatpush1.msra.mxu0 0.0
    %392 = vmatprep.subr.mxu0 0.0
    %393 = vmatpush1.msra.mxu0 0.0
    %394 = vmatprep.subr.mxu0 0.0
    %395 = vmatpush1.msra.mxu0 0.0
    %396 = vmatprep.subr.mxu0 0.0
    %397 = vmatpush1.msra.mxu0 0.0
    %398 = vmatprep.subr.mxu0 0.0
    %399 = vmatpush1.msra.mxu0 0.0
    %400 = vmatprep.subr.mxu0 0.0
    %401 = vmatpush1.msra.mxu0 0.0
    %402 = vmatprep.subr.mxu0 0.0
    %403 = vmatpush1.msra.mxu0 0.0
    %404 = vmatprep.subr.mxu0 0.0
    %405 = vmatpush1.msra.mxu0 0.0
    %406 = vmatprep.subr.mxu0 0.0
    %407 = vmatpush1.msra.mxu0 0.0
    %408 = vmatprep.subr.mxu0 0.0
    %409 = vmatpush1.msra.mxu0 0.0
    %410 = vmatprep.subr.mxu0 0.0
    %411 = vmatpush1.msra.mxu0 0.0
    %412 = vmatprep.subr.mxu0 0.0
    %413 = vmatpush1.msra.mxu0 0.0
    %414 = vmatprep.mubr.f32.mxu0 0.0
    %415 = vmatmul.mubr.f32.gmra.mrb[0].mxu0 %v326
    %v416 = vpop.f32.mrb[0].mxu0
    %v417 = vadd.f32 %v348, %v416
    %v418 = vpop.f32.mrb[0].mxu0
    %419 = vdwg.mxu0
    %v420 = vmax.f32 %v417, 0.0
    %v421 = vrot.slane %v420, 4
    %v422 = vadd.f32 %v420, %v421
    %v423 = vrot.slane %v422, 2
    %v424 = vadd.f32 %v422, %v423
    %v425 = vrot.slane %v424, 1
    %v426 = vadd.f32 %v424, %v425
    %v427 = vmul.f32 %v426, %v200
    %v428 = vsub.f32 %v420, %v427
    %v429 = vmul.f32 %v428, %v428
    %v430 = vrot.slane %v429, 4
    %v431 = vadd.f32 %v429, %v430
    %v432 = vrot.slane %v431, 2
    %v433 = vadd.f32 %v431, %v432
    %v434 = vrot.slane %v433, 1
    %v435 = vadd.f32 %v433, %v434
    %v436 = vmul.f32 %v435, %v200
    %v437 = vadd.f32 %v436, 1e-05
    %v438 = vrsqrt.pop %v437
    %v439 = vmul.f32 %v428, %v438
    %v440 = vld [vmem:[#allocation10] sm:$0xff]
    %v441 = vld [vmem:[#allocation10 + $0x8] sm:$0xff]
    %v442 = vld [vmem:[#allocation10 + $0x10] sm:$0xff]
    %v443 = vld [vmem:[#allocation10 + $0x18] sm:$0xff]
    %v444 = vld [vmem:[#allocation10 + $0x20] sm:$0xff]
    %v445 = vld [vmem:[#allocation10 + $0x28] sm:$0xff]
    %v446 = vld [vmem:[#allocation10 + $0x30] sm:$0xff]
    %v447 = vld [vmem:[#allocation10 + $0x38] sm:$0xff]
    %v448 = vld [vmem:[#allocation10 + $0x40] sm:$0xff]
    %v449 = vld [vmem:[#allocation10 + $0x48] sm:$0xff]
    %v450 = vld [vmem:[#allocation10 + $0x50] sm:$0xff]
    %v451 = vld [vmem:[#allocation10 + $0x58] sm:$0xff]
    %v452 = vld [vmem:[#allocation10 + $0x60] sm:$0xff]
    %v453 = vld [vmem:[#allocation10 + $0x68] sm:$0xff]
    %v454 = vld [vmem:[#allocation10 + $0x70] sm:$0xff]
    %v455 = vld [vmem:[#allocation10 + $0x78] sm:$0xff]
    %v456 = vld [vmem:[%s8] sm:$0x1]
    %v458 = vlaneseq
    %v459 = vshrl.u32 %v458, 7
    %v460 = vsub.s32 0, %v459
    %v461 = vrot.slane %v456, %v460
    %463 = vmatprep.subr.mxu0 0.0
    %464 = vmatpush1.msra.mxu0 %v440
    %465 = vmatprep.subr.mxu0 0.0
    %466 = vmatpush1.msra.mxu0 %v441
    %467 = vmatprep.subr.mxu0 0.0
    %468 = vmatpush1.msra.mxu0 %v442
    %469 = vmatprep.subr.mxu0 0.0
    %470 = vmatpush1.msra.mxu0 %v443
    %471 = vmatprep.subr.mxu0 0.0
    %472 = vmatpush1.msra.mxu0 %v444
    %473 = vmatprep.subr.mxu0 0.0
    %474 = vmatpush1.msra.mxu0 %v445
    %475 = vmatprep.subr.mxu0 0.0
    %476 = vmatpush1.msra.mxu0 %v446
    %477 = vmatprep.subr.mxu0 0.0
    %478 = vmatpush1.msra.mxu0 %v447
    %479 = vmatprep.subr.mxu0 0.0
    %480 = vmatpush1.msra.mxu0 %v448
    %481 = vmatprep.subr.mxu0 0.0
    %482 = vmatpush1.msra.mxu0 %v449
    %483 = vmatprep.subr.mxu0 0.0
    %484 = vmatpush1.msra.mxu0 %v450
    %485 = vmatprep.subr.mxu0 0.0
    %486 = vmatpush1.msra.mxu0 %v451
    %487 = vmatprep.subr.mxu0 0.0
    %488 = vmatpush1.msra.mxu0 %v452
    %489 = vmatprep.subr.mxu0 0.0
    %490 = vmatpush1.msra.mxu0 %v453
    %491 = vmatprep.subr.mxu0 0.0
    %492 = vmatpush1.msra.mxu0 %v454
    %493 = vmatprep.subr.mxu0 0.0
    %494 = vmatpush1.msra.mxu0 %v455
    %495 = vmatprep.subr.mxu0 0.0
    %496 = vmatpush1.msra.mxu0 0.0
    %497 = vmatprep.subr.mxu0 0.0
    %498 = vmatpush1.msra.mxu0 0.0
    %499 = vmatprep.subr.mxu0 0.0
    %500 = vmatpush1.msra.mxu0 0.0
    %501 = vmatprep.subr.mxu0 0.0
    %502 = vmatpush1.msra.mxu0 0.0
    %503 = vmatprep.subr.mxu0 0.0
    %504 = vmatpush1.msra.mxu0 0.0
    %505 = vmatprep.subr.mxu0 0.0
    %506 = vmatpush1.msra.mxu0 0.0
    %507 = vmatprep.subr.mxu0 0.0
    %508 = vmatpush1.msra.mxu0 0.0
    %509 = vmatprep.subr.mxu0 0.0
    %510 = vmatpush1.msra.mxu0 0.0
    %511 = vmatprep.subr.mxu0 0.0
    %512 = vmatpush1.msra.mxu0 0.0
    %513 = vmatprep.subr.mxu0 0.0
    %514 = vmatpush1.msra.mxu0 0.0
    %515 = vmatprep.subr.mxu0 0.0
    %516 = vmatpush1.msra.mxu0 0.0
    %517 = vmatprep.subr.mxu0 0.0
    %518 = vmatpush1.msra.mxu0 0.0
    %519 = vmatprep.subr.mxu0 0.0
    %520 = vmatpush1.msra.mxu0 0.0
    %521 = vmatprep.subr.mxu0 0.0
    %522 = vmatpush1.msra.mxu0 0.0
    %523 = vmatprep.subr.mxu0 0.0
    %524 = vmatpush1.msra.mxu0 0.0
    %525 = vmatprep.subr.mxu0 0.0
    %526 = vmatpush1.msra.mxu0 0.0
    %527 = vmatprep.mubr.f32.mxu0 0.0
    %528 = vmatmul.mubr.f32.gmra.mrb[0].mxu0 %v439
    %v529 = vpop.f32.mrb[0].mxu0
    %v530 = vadd.f32 %v461, %v529
    %v531 = vpop.f32.mrb[0].mxu0
    %532 = vdwg.mxu0
    %533 = vst [vmem:[#allocation11] sm:$0xff] %v530
    // Predicated region
    $region58: #{tpu_custom_call.1} parent=1 // pred_check
      _
    $region59: #{tpu_custom_call.1} parent=1 // pred_check_branch
      %535 = sbr.rel (0) target = $region61
    $region60: #{tpu_custom_call.1} parent=1 // pred_region
      %s537 = ssub.s32 128, 128
      %538 = vsyncadd [#allocation4], %s537
      %s540 = sshll.u32 [#allocation11], 4
      %s541 = int_to_ptr.vmem [resolvable:$true] %s540
      %543 = dma.vmem_to_hbm [thread:$0]  %s541, 128, %s9, [#allocation4]
    $region61: #{tpu_custom_call.1} parent=1 // pred_fallthru
      _
    // Predicated region
    $region62: #{tpu_custom_call.1} parent=1 // pred_check
      _
    $region63: #{tpu_custom_call.1} parent=1 // pred_check_branch
      %545 = sbr.rel (0) target = $region65
    $region64: #{tpu_custom_call.1} parent=1 // pred_region
      %546 = dma.done [#allocation4], 128
    $region65: #{tpu_custom_call.1} parent=1 // pred_fallthru
      _
    %547 = vsyncpa [#allocation3], 1
    %548 = vsyncpa [#allocation6], 1
    %549 = vsyncpa [#allocation9], 1
    %550 = vsyncpa [#allocation4], 1

</llo_original>
